<compile_context>
chip_gen: v5e
topology: v5e:2x2
jax: 0.10.0
libtpu: 0.0.40
codegen_flags: <defaults>
</compile_context>

<pallas_src>
import functools

import jax
import jax.numpy as jnp
from jax.experimental import pallas as pl
from jax.experimental.pallas import tpu as pltpu


def convlstm_kernel(patch_ref, w_ref, b_ref, cprev_ref, h_ref, c_ref, *, hidden):
    """One (batch, spatial-tile) per grid step.

    patch_ref : (1, KKC_pad, T)      bf16  im2col patches, channel-major columns
    w_ref     : (4*hidden, KKC_pad)  bf16  conv weight, output-channel major
    b_ref     : (4*hidden, 1)        f32   conv bias
    cprev_ref : (1, hidden, T)       f32   previous cell state (channel-major)
    h_ref     : (1, hidden, T)       f32   output hidden state
    c_ref     : (1, hidden, T)       f32   output cell state
    """
    # Single deep MXU matmul: (4h, KKC) @ (KKC, T) -> (4h, T), f32 accumulation.
    gates = jnp.dot(w_ref[...], patch_ref[0],
                    preferred_element_type=jnp.float32)
    gates = gates + b_ref[...]                         # lane-broadcast bias

    # PyTorch chunk order along output channels: [in, remember, out, cell].
    # Rows are sublane-aligned slices (multiples of 8) -> no lane relayouts.
    i_g = jax.nn.sigmoid(gates[0 * hidden:1 * hidden, :])
    f_g = jax.nn.sigmoid(gates[1 * hidden:2 * hidden, :])
    o_g = jax.nn.sigmoid(gates[2 * hidden:3 * hidden, :])
    g_g = jnp.tanh(gates[3 * hidden:4 * hidden, :])

    c_prev = cprev_ref[0]
    c_new = f_g * c_prev + i_g * g_g
    h_new = o_g * jnp.tanh(c_new)

    c_ref[0] = c_new.astype(c_ref.dtype)
    h_ref[0] = h_new.astype(h_ref.dtype)


def conv_lstm_forward(x_nchw, weight, bias, prev_state=None):
    """Pallas ConvLSTM forward (matches the PyTorch module's 2d path).

    x_nchw : (B, C_in, H, W)                 float32, PyTorch NCHW
    weight : (4*hidden, C_in+hidden, K, K)   PyTorch OIHW conv weight
    bias   : (4*hidden,)
    returns (hidden, cell), each (B, hidden, H, W) NCHW.
    """
    B, C_in, H, W = x_nchw.shape
    hidden4, C_total, K, _ = weight.shape
    hidden = hidden4 // 4
    assert C_total == C_in + hidden
    pad = K // 2
    HW = H * W

    if prev_state is None:
        zeros = jnp.zeros((B, hidden, H, W), x_nchw.dtype)
        prev_state = (zeros, zeros)
    prev_h, prev_c = prev_state

    # ---- wrapper-side layout prep (fused gather pass in XLA, stays NCHW) ----
    # im2col with channel-major columns:
    #   patches[b, (dy*K+dx)*C + c, y*W + x] = pad(cat(x, prev_h))[b, c, y+dy, x+dx]
    stacked = jnp.concatenate([x_nchw, prev_h], axis=1)                # (B, C, H, W)
    xpad = jnp.pad(stacked, ((0, 0), (0, 0), (pad, pad), (pad, pad)))  # (B, C, Hp, Wp)
    cols = [xpad[:, :, dy:dy + H, dx:dx + W].reshape(B, C_total, HW)
            for dy in range(K) for dx in range(K)]
    patches = jnp.concatenate(cols, axis=1)                            # (B, K*K*C, HW)

    kkc = K * K * C_total
    kkc_pad = ((kkc + 15) // 16) * 16            # bf16 sublane granule
    patches = jnp.pad(patches, ((0, 0), (0, kkc_pad - kkc), (0, 0)))
    patches = patches.astype(jnp.bfloat16)

    # weight -> (4*hidden, K*K*C), tap-major then channel (matches patches).
    w_t = jnp.transpose(weight, (0, 2, 3, 1)).reshape(hidden4, kkc)
    w_t = jnp.pad(w_t, ((0, 0), (0, kkc_pad - kkc))).astype(jnp.bfloat16)
    b_t = bias.reshape(hidden4, 1).astype(jnp.float32)

    # NCHW -> channel-major (B, hidden, HW) is a free reshape (no transpose).
    cprev_cm = prev_c.reshape(B, hidden, HW)

    # Spatial tiling: 128 lanes per step (lane-dense stores, bounded vreg
    # pressure, second parallel grid axis for v7x's two TensorCores).
    tile_hw = 128 if HW % 128 == 0 else HW
    n_tiles = HW // tile_hw

    kernel = functools.partial(convlstm_kernel, hidden=hidden)

    cost = pl.CostEstimate(
        flops=int(2 * B * HW * kkc_pad * hidden4),
        transcendentals=int(5 * B * HW * hidden),
        bytes_accessed=int(patches.size * 2 + w_t.size * 2 + b_t.size * 4
                           + cprev_cm.size * 4 + 2 * B * hidden * HW * 4),
    )

    h_cm, c_cm = pl.pallas_call(
        kernel,
        out_shape=(jax.ShapeDtypeStruct((B, hidden, HW), jnp.float32),
                   jax.ShapeDtypeStruct((B, hidden, HW), jnp.float32)),
        grid_spec=pltpu.PrefetchScalarGridSpec(
            num_scalar_prefetch=0,
            grid=(B, n_tiles),
            in_specs=[
                pl.BlockSpec((1, kkc_pad, tile_hw), lambda b, t: (b, 0, t)),
                pl.BlockSpec((hidden4, kkc_pad), lambda b, t: (0, 0)),
                pl.BlockSpec((hidden4, 1), lambda b, t: (0, 0)),
                pl.BlockSpec((1, hidden, tile_hw), lambda b, t: (b, 0, t)),
            ],
            out_specs=[
                pl.BlockSpec((1, hidden, tile_hw), lambda b, t: (b, 0, t)),
                pl.BlockSpec((1, hidden, tile_hw), lambda b, t: (b, 0, t)),
            ],
        ),
        compiler_params=pltpu.CompilerParams(
            dimension_semantics=("parallel", "parallel")),
        cost_estimate=cost,
    )(patches, w_t, b_t, cprev_cm)

    # (B, hidden, HW) == NCHW reshaped: free view, no output transpose.
    return h_cm.reshape(B, hidden, H, W), c_cm.reshape(B, hidden, H, W)


def conv_lstm_reference(x_nchw, weight, bias, prev_state=None):
    """Pure-JAX reference mirroring the PyTorch module exactly (f32)."""
    B, C_in, H, W = x_nchw.shape
    hidden4 = weight.shape[0]
    hidden = hidden4 // 4
    pad = weight.shape[2] // 2
    if prev_state is None:
        zeros = jnp.zeros((B, hidden, H, W), x_nchw.dtype)
        prev_state = (zeros, zeros)
    prev_h, prev_c = prev_state
    stacked = jnp.concatenate([x_nchw, prev_h], axis=1)
    gates = jax.lax.conv_general_dilated(
        stacked, weight, window_strides=(1, 1),
        padding=[(pad, pad), (pad, pad)],
        dimension_numbers=('NCHW', 'OIHW', 'NCHW'))
    gates = gates + bias[None, :, None, None]
    i_g, f_g, o_g, g_g = jnp.split(gates, 4, axis=1)
    cell = jax.nn.sigmoid(f_g) * prev_c + jax.nn.sigmoid(i_g) * jnp.tanh(g_g)
    hid = jax.nn.sigmoid(o_g) * jnp.tanh(cell)
    return hid, cell


if __name__ == "__main__":
    # Small shapes consistent with the module's forward.
    B, C_in, H, W = 2, 4, 16, 16
    hidden, K = 32, 3
    C_total = C_in + hidden

    key = jax.random.PRNGKey(0)
    kx, kw, kb, kh, kc = jax.random.split(key, 5)
    x = jax.random.normal(kx, (B, C_in, H, W), dtype=jnp.float32)
    # Deterministic synthetic parameters (same shapes as nn.Conv2d in __init__).
    weight = 0.1 * jax.random.normal(kw, (4 * hidden, C_total, K, K),
                                     dtype=jnp.float32)
    bias = 0.1 * jax.random.normal(kb, (4 * hidden,), dtype=jnp.float32)

    # Case 1: default path (prev_state = zeros), as in the PyTorch forward.
    h_out, c_out = conv_lstm_forward(x, weight, bias, prev_state=None)
    jax.block_until_ready((h_out, c_out))
    h_ref, c_ref = conv_lstm_reference(x, weight, bias, prev_state=None)
    assert h_out.shape == (B, hidden, H, W) and c_out.shape == (B, hidden, H, W)
    # bf16 matmul operands (f32 accumulation) -> relaxed tolerance vs f32 ref.
    assert jnp.allclose(h_out, h_ref, atol=3e-2, rtol=3e-2)
    assert jnp.allclose(c_out, c_ref, atol=3e-2, rtol=3e-2)

    # Case 2: explicit previous state.
    prev_h = 0.5 * jax.random.normal(kh, (B, hidden, H, W), dtype=jnp.float32)
    prev_c = 0.5 * jax.random.normal(kc, (B, hidden, H, W), dtype=jnp.float32)
    h_out2, c_out2 = conv_lstm_forward(x, weight, bias,
                                       prev_state=(prev_h, prev_c))
    jax.block_until_ready((h_out2, c_out2))
    h_ref2, c_ref2 = conv_lstm_reference(x, weight, bias,
                                         prev_state=(prev_h, prev_c))
    assert jnp.allclose(h_out2, h_ref2, atol=3e-2, rtol=3e-2)
    assert jnp.allclose(c_out2, c_ref2, atol=3e-2, rtol=3e-2)

    print("KERNEL_OK")
</pallas_src>

<mosaic_0001>
module attributes {stable_mosaic.version = 11 : i64} {
  func.func @convlstm_kernel(%arg0: i32, %arg1: i32, %arg2: memref<1x336x128xbf16, #tpu.memory_space<vmem>>, %arg3: memref<128x336xbf16, #tpu.memory_space<vmem>>, %arg4: memref<128x1xf32, #tpu.memory_space<vmem>>, %arg5: memref<1x32x128xf32, #tpu.memory_space<vmem>>, %arg6: memref<1x32x128xf32, #tpu.memory_space<vmem>>, %arg7: memref<1x32x128xf32, #tpu.memory_space<vmem>>) attributes {dimension_semantics = [#tpu.dimension_semantics<parallel>, #tpu.dimension_semantics<parallel>], iteration_bounds = array<i64: 2, 2>, scalar_prefetch = 0 : i64, scratch_operands = 0 : i64, tpu.core_type = #tpu.core_type<tc>, window_params = [{transform_indices = @transform_0, window_bounds = array<i64: 1, 336, 128>}, {pipeline_mode = #tpu.pipeline_mode<synchronous>, transform_indices = @transform_1, window_bounds = array<i64: 128, 336>}, {pipeline_mode = #tpu.pipeline_mode<synchronous>, transform_indices = @transform_2, window_bounds = array<i64: 128, 1>}, {transform_indices = @transform_3, window_bounds = array<i64: 1, 32, 128>}, {transform_indices = @transform_4, window_bounds = array<i64: 1, 32, 128>}, {transform_indices = @transform_5, window_bounds = array<i64: 1, 32, 128>}]} {
    %c0 = arith.constant 0 : index
    %c0_0 = arith.constant 0 : index
    %0 = vector.load %arg3[%c0, %c0_0] : memref<128x336xbf16, #tpu.memory_space<vmem>>, vector<128x336xbf16>
    %c0_1 = arith.constant 0 : index
    %c0_2 = arith.constant 0 : index
    %c0_3 = arith.constant 0 : index
    %1 = vector.load %arg2[%c0_1, %c0_2, %c0_3] : memref<1x336x128xbf16, #tpu.memory_space<vmem>>, vector<1x336x128xbf16>
    %2 = vector.shape_cast %1 : vector<1x336x128xbf16> to vector<336x128xbf16>
    %cst = arith.constant dense<0.000000e+00> : vector<128x128xf32>
    %3 = tpu.matmul %0, %2, %cst {dimension_numbers = #tpu.dot_dimension_numbers<[1], [0], [0], [1], [0, 0, 1, 1], [], []>} : vector<128x336xbf16>, vector<336x128xbf16>, vector<128x128xf32> -> vector<128x128xf32>
    %c0_4 = arith.constant 0 : index
    %c0_5 = arith.constant 0 : index
    %4 = vector.load %arg4[%c0_4, %c0_5] : memref<128x1xf32, #tpu.memory_space<vmem>>, vector<128x1xf32>
    %5 = vector.broadcast %4 : vector<128x1xf32> to vector<128x128xf32>
    %6 = arith.addf %3, %5 : vector<128x128xf32>
    %7 = vector.extract_strided_slice %6 {offsets = [0, 0], sizes = [32, 128], strides = [1, 1]} : vector<128x128xf32> to vector<32x128xf32>
    %8 = arith.negf %7 : vector<32x128xf32>
    %9 = math.exp %8 : vector<32x128xf32>
    %cst_6 = arith.constant 1.000000e+00 : f32
    %10 = vector.broadcast %cst_6 : f32 to vector<32x128xf32>
    %11 = arith.addf %10, %9 : vector<32x128xf32>
    %12 = arith.divf %10, %11 : vector<32x128xf32>
    %13 = vector.extract_strided_slice %6 {offsets = [32, 0], sizes = [32, 128], strides = [1, 1]} : vector<128x128xf32> to vector<32x128xf32>
    %14 = arith.negf %13 : vector<32x128xf32>
    %15 = math.exp %14 : vector<32x128xf32>
    %cst_7 = arith.constant 1.000000e+00 : f32
    %16 = vector.broadcast %cst_7 : f32 to vector<32x128xf32>
    %17 = arith.addf %16, %15 : vector<32x128xf32>
    %18 = arith.divf %16, %17 : vector<32x128xf32>
    %19 = vector.extract_strided_slice %6 {offsets = [64, 0], sizes = [32, 128], strides = [1, 1]} : vector<128x128xf32> to vector<32x128xf32>
    %20 = arith.negf %19 : vector<32x128xf32>
    %21 = math.exp %20 : vector<32x128xf32>
    %cst_8 = arith.constant 1.000000e+00 : f32
    %22 = vector.broadcast %cst_8 : f32 to vector<32x128xf32>
    %23 = arith.addf %22, %21 : vector<32x128xf32>
    %24 = arith.divf %22, %23 : vector<32x128xf32>
    %25 = vector.extract_strided_slice %6 {offsets = [96, 0], sizes = [32, 128], strides = [1, 1]} : vector<128x128xf32> to vector<32x128xf32>
    %26 = math.tanh %25 : vector<32x128xf32>
    %c0_9 = arith.constant 0 : index
    %c0_10 = arith.constant 0 : index
    %c0_11 = arith.constant 0 : index
    %27 = vector.load %arg5[%c0_9, %c0_10, %c0_11] : memref<1x32x128xf32, #tpu.memory_space<vmem>>, vector<1x32x128xf32>
    %28 = vector.shape_cast %27 : vector<1x32x128xf32> to vector<32x128xf32>
    %29 = arith.mulf %18, %28 : vector<32x128xf32>
    %30 = arith.mulf %12, %26 : vector<32x128xf32>
    %31 = arith.addf %29, %30 : vector<32x128xf32>
    %32 = math.tanh %31 : vector<32x128xf32>
    %33 = arith.mulf %24, %32 : vector<32x128xf32>
    %c0_12 = arith.constant 0 : index
    %c0_13 = arith.constant 0 : index
    %c0_14 = arith.constant 0 : index
    %34 = vector.load %arg7[%c0_12, %c0_13, %c0_14] : memref<1x32x128xf32, #tpu.memory_space<vmem>>, vector<1x32x128xf32>
    %35 = vector.shape_cast %34 : vector<1x32x128xf32> to vector<32x128xf32>
    %36 = vector.shape_cast %31 : vector<32x128xf32> to vector<1x32x128xf32>
    tpu.vector_store %arg7[%c0_12, %c0_13, %c0_14], %36 {strides = array<i32>} : memref<1x32x128xf32, #tpu.memory_space<vmem>>, vector<1x32x128xf32>,
    %c0_15 = arith.constant 0 : index
    %c0_16 = arith.constant 0 : index
    %c0_17 = arith.constant 0 : index
    %37 = vector.load %arg6[%c0_15, %c0_16, %c0_17] : memref<1x32x128xf32, #tpu.memory_space<vmem>>, vector<1x32x128xf32>
    %38 = vector.shape_cast %37 : vector<1x32x128xf32> to vector<32x128xf32>
    %39 = vector.shape_cast %33 : vector<32x128xf32> to vector<1x32x128xf32>
    tpu.vector_store %arg6[%c0_15, %c0_16, %c0_17], %39 {strides = array<i32>} : memref<1x32x128xf32, #tpu.memory_space<vmem>>, vector<1x32x128xf32>,
    return
  }
  func.func @transform_0(%arg0: i32, %arg1: i32) -> (i32, i32, i32) {
    %c0_i32 = arith.constant 0 : i32
    %c0_i32_0 = arith.constant 0 : i32
    return %arg0, %c0_i32, %arg1 : i32, i32, i32
  }
  func.func @transform_1(%arg0: i32, %arg1: i32) -> (i32, i32) {
    %c0_i32 = arith.constant 0 : i32
    %c0_i32_0 = arith.constant 0 : i32
    %c0_i32_1 = arith.constant 0 : i32
    return %c0_i32, %c0_i32_0 : i32, i32
  }
  func.func @transform_2(%arg0: i32, %arg1: i32) -> (i32, i32) {
    %c0_i32 = arith.constant 0 : i32
    %c0_i32_0 = arith.constant 0 : i32
    %c0_i32_1 = arith.constant 0 : i32
    return %c0_i32, %c0_i32_0 : i32, i32
  }
  func.func @transform_3(%arg0: i32, %arg1: i32) -> (i32, i32, i32) {
    %c0_i32 = arith.constant 0 : i32
    %c0_i32_0 = arith.constant 0 : i32
    return %arg0, %c0_i32, %arg1 : i32, i32, i32
  }
  func.func @transform_4(%arg0: i32, %arg1: i32) -> (i32, i32, i32) {
    %c0_i32 = arith.constant 0 : i32
    %c0_i32_0 = arith.constant 0 : i32
    return %arg0, %c0_i32, %arg1 : i32, i32, i32
  }
  func.func @transform_5(%arg0: i32, %arg1: i32) -> (i32, i32, i32) {
    %c0_i32 = arith.constant 0 : i32
    %c0_i32_0 = arith.constant 0 : i32
    return %arg0, %c0_i32, %arg1 : i32, i32, i32
  }
}

</mosaic_0001>

<llo_original>
// kernel: tpu_custom_call.1
$region0: #{tpu_custom_call.1}
  #allocation0 [shape = 'u32[]', space=smem, size = 0x4, offset = 0x4, fixed_abs, tag = 'smem constant byte address 0x4 - core index']
  #allocation1 [shape = 'u32[72,128]{1,0:T(1,128)}', space=vmem, size = 0x9000, scoped, tag = 'internal scratch']
  %s0 = inlined_call_operand.hbm [shape: bf16[2,336,256], index: 0, kind: input, shape index: {}]
  %s1 = inlined_call_operand.vmem [shape: bf16[128,336], index: 1, kind: input, shape index: {}]
  %s2 = inlined_call_operand.vmem [shape: f32[128,1], index: 2, kind: input, shape index: {}]
  %s3 = inlined_call_operand.vmem [shape: f32[2,32,256], index: 3, kind: input, shape index: {}]
  %s4 = inlined_call_operand.hbm [shape: f32[2,32,256], index: 4, kind: output, shape index: {0}]
  %s5 = inlined_call_operand.hbm [shape: f32[2,32,256], index: 5, kind: output, shape index: {1}]
  %6 = xla_tuple %s4, %s5
  %s7 = sld [smem:[#allocation0]]
  $region99: #{tpu_custom_call.1} parent=0
    _
  %s9 = ssub.s32 1, %s7
  %s10 = scalar_select 0, %s9, %s7
  $region1: #{tpu_custom_call.1} parent=0
    #allocation2 [shape = 'u8[172032]{0}', space=vmem, size = 0x2a000, scoped, tag = 'input window, operand 0']
    #allocation3 [shape = 's32[2]{0}', space=sflag, size = 0x8, scoped, tag = 'scoped memory for tpu_custom_call.1']
    #allocation4 [shape = 's32[2]{0}', space=sflag, size = 0x8, scoped, tag = 'scoped memory for tpu_custom_call.1']
    #allocation5 [shape = 'u8[32768]{0}', space=vmem, size = 0x8000, scoped, tag = 'input window, operand 3']
    #allocation6 [shape = 'u8[32768]{0}', space=vmem, size = 0x8000, scoped, tag = 'output window, operand 0']
    #allocation7 [shape = 'u8[32768]{0}', space=vmem, size = 0x8000, scoped, tag = 'output window, operand 1']
    #allocation8 [shape = 's32[2]{0}', space=sflag, size = 0x8, scoped, tag = 'scoped memory for tpu_custom_call.1']
    %11 = vsyncpa [#allocation3], 0
    %s12 = scalar_lea.sflag [#allocation3], 1
    %13 = vsyncpa %s12, 0
    %14 = vsyncpa [#allocation4], 0
    %s15 = scalar_lea.sflag [#allocation4], 1
    %16 = vsyncpa %s15, 0
    %17 = vsyncpa [#allocation8], 0
    %s18 = scalar_lea.sflag [#allocation8], 1
    %19 = vsyncpa %s18, 0
    loop: start=0, step=1, limit=6
    $region2: #{tpu_custom_call.1} parent=1 // loop_pre_header
      _
    $region3: #{tpu_custom_call.1} parent=1 // loop_header
      %s21 = sphi 0, %s25
      %p22 = scmp.ge.s32.totalorder %s21, 6
      %s28 = sphi 0, %s40
      %s29 = sphi 0, %s36
      %s30 = sphi 0, %s28
      %s31 = sphi 0, %s29
      %s32 = sphi 0, %s30
      %s33 = sphi 0, %s31
      %s45 = sphi 0, %s47
      %s48 = sphi 0, %s45
      %s49 = sphi 0, %s48
      %s65 = sphi 0, %s49
      %s69 = sphi 0, %s69
      %s71 = sphi 0, %s69
      %s72 = sphi 0, %s71
      %s86 = sphi 0, %s72
      %s90 = sphi 0, %s90
      %s92 = sphi 0, %s90
      %s93 = sphi 0, %s92
      %s107 = sphi 0, %s93
      %s115 = sphi 0, %s117
      %s118 = sphi 0, %s115
      %s119 = sphi 0, %s118
      %s135 = sphi 0, %s119
      %s143 = sphi 0, %s145
      %s146 = sphi 0, %s143
      %s147 = sphi 0, %s146
      %s163 = sphi 0, %s147
      %s171 = sphi 0, %s173
      %s174 = sphi 0, %s171
      %s175 = sphi 0, %s174
      %s191 = sphi 0, %s175
    $region4: #{tpu_custom_call.1} parent=1 // loop_header_branch
      %24 = sbr.rel (%p22) target = $region8
    $region5: #{tpu_custom_call.1} parent=1 // loop_body
      %s26 = ssub.s32 %s21, 1
      %s27 = ssub.s32 %s21, 2
      %s34 = sadd.s32 1, %s29
      %p35 = scmp.ge.s32.totalorder %s34, 2
      %s36 = scalar_select %p35, 0, %s34
      %s37 = sadd.s32 1, %s28
      %s38 = scalar_select %p35, %s37, %s28
      %p39 = scmp.ge.s32.totalorder %s38, 2
      %s40 = scalar_select %p39, 0, %s38
      %s41 = ssub.s32 %s28, %s40
      %s42 = ssub.s32 %s29, %s36
      %s43 = sor.u32 %s41, %s42
      %p44 = scmp.eq.s32.totalorder %s43, 0
      %s46 = sadd.s32 %s45, 1
      %s47 = scalar_select %p44, %s45, %s46
      %p50 = pneg %p44
      %p51 = scmp.eq.s32.totalorder %s21, 3
      %p52 = por %p50, %p51
      %p53 = scmp.ne.s32.totalorder %s45, %s48
      %p54 = scmp.eq.s32.totalorder %s21, 0
      %p55 = por %p53, %p54
      %p56 = scmp.ne.s32.totalorder %s45, %s48
      %p57 = scmp.eq.s32.totalorder %s26, 3
      %p58 = por %p56, %p57
      %p59 = scmp.ne.s32.totalorder %s48, %s49
      %p60 = scmp.eq.s32.totalorder %s26, 0
      %p61 = por %p59, %p60
      %p62 = scmp.ne.s32.totalorder %s48, %s49
      %p63 = scmp.eq.s32.totalorder %s27, 3
      %p64 = por %p62, %p63
      %p66 = scmp.ne.s32.totalorder %s49, %s65
      %p67 = scmp.eq.s32.totalorder %s27, 0
      %p68 = por %p66, %p67
      %s70 = sadd.s32 %s69, 1
      %p73 = scmp.eq.s32.totalorder %s21, 3
      %p74 = scmp.ne.s32.totalorder %s69, %s71
      %p75 = scmp.eq.s32.totalorder %s21, 0
      %p76 = por %p74, %p75
      %p77 = scmp.ne.s32.totalorder %s69, %s71
      %p78 = scmp.eq.s32.totalorder %s26, 3
      %p79 = por %p77, %p78
      %p80 = scmp.ne.s32.totalorder %s71, %s72
      %p81 = scmp.eq.s32.totalorder %s26, 0
      %p82 = por %p80, %p81
      %p83 = scmp.ne.s32.totalorder %s71, %s72
      %p84 = scmp.eq.s32.totalorder %s27, 3
      %p85 = por %p83, %p84
      %p87 = scmp.ne.s32.totalorder %s72, %s86
      %p88 = scmp.eq.s32.totalorder %s27, 0
      %p89 = por %p87, %p88
      %s91 = sadd.s32 %s90, 1
      %p94 = scmp.eq.s32.totalorder %s21, 3
      %p95 = scmp.ne.s32.totalorder %s90, %s92
      %p96 = scmp.eq.s32.totalorder %s21, 0
      %p97 = por %p95, %p96
      %p98 = scmp.ne.s32.totalorder %s90, %s92
      %p99 = scmp.eq.s32.totalorder %s26, 3
      %p100 = por %p98, %p99
      %p101 = scmp.ne.s32.totalorder %s92, %s93
      %p102 = scmp.eq.s32.totalorder %s26, 0
      %p103 = por %p101, %p102
      %p104 = scmp.ne.s32.totalorder %s92, %s93
      %p105 = scmp.eq.s32.totalorder %s27, 3
      %p106 = por %p104, %p105
      %p108 = scmp.ne.s32.totalorder %s93, %s107
      %p109 = scmp.eq.s32.totalorder %s27, 0
      %p110 = por %p108, %p109
      %s111 = ssub.s32 %s28, %s40
      %s112 = ssub.s32 %s29, %s36
      %s113 = sor.u32 %s111, %s112
      %p114 = scmp.eq.s32.totalorder %s113, 0
      %s116 = sadd.s32 %s115, 1
      %s117 = scalar_select %p114, %s115, %s116
      %p120 = pneg %p114
      %p121 = scmp.eq.s32.totalorder %s21, 3
      %p122 = por %p120, %p121
      %p123 = scmp.ne.s32.totalorder %s115, %s118
      %p124 = scmp.eq.s32.totalorder %s21, 0
      %p125 = por %p123, %p124
      %p126 = scmp.ne.s32.totalorder %s115, %s118
      %p127 = scmp.eq.s32.totalorder %s26, 3
      %p128 = por %p126, %p127
      %p129 = scmp.ne.s32.totalorder %s118, %s119
      %p130 = scmp.eq.s32.totalorder %s26, 0
      %p131 = por %p129, %p130
      %p132 = scmp.ne.s32.totalorder %s118, %s119
      %p133 = scmp.eq.s32.totalorder %s27, 3
      %p134 = por %p132, %p133
      %p136 = scmp.ne.s32.totalorder %s119, %s135
      %p137 = scmp.eq.s32.totalorder %s27, 0
      %p138 = por %p136, %p137
      %s139 = ssub.s32 %s28, %s40
      %s140 = ssub.s32 %s29, %s36
      %s141 = sor.u32 %s139, %s140
      %p142 = scmp.eq.s32.totalorder %s141, 0
      %s144 = sadd.s32 %s143, 1
      %s145 = scalar_select %p142, %s143, %s144
      %p148 = pneg %p142
      %p149 = scmp.eq.s32.totalorder %s21, 3
      %p150 = por %p148, %p149
      %p151 = scmp.ne.s32.totalorder %s143, %s146
      %p152 = scmp.eq.s32.totalorder %s21, 0
      %p153 = por %p151, %p152
      %p154 = scmp.ne.s32.totalorder %s143, %s146
      %p155 = scmp.eq.s32.totalorder %s26, 3
      %p156 = por %p154, %p155
      %p157 = scmp.ne.s32.totalorder %s146, %s147
      %p158 = scmp.eq.s32.totalorder %s26, 0
      %p159 = por %p157, %p158
      %p160 = scmp.ne.s32.totalorder %s146, %s147
      %p161 = scmp.eq.s32.totalorder %s27, 3
      %p162 = por %p160, %p161
      %p164 = scmp.ne.s32.totalorder %s147, %s163
      %p165 = scmp.eq.s32.totalorder %s27, 0
      %p166 = por %p164, %p165
      %s167 = ssub.s32 %s28, %s40
      %s168 = ssub.s32 %s29, %s36
      %s169 = sor.u32 %s167, %s168
      %p170 = scmp.eq.s32.totalorder %s169, 0
      %s172 = sadd.s32 %s171, 1
      %s173 = scalar_select %p170, %s171, %s172
      %p176 = pneg %p170
      %p177 = scmp.eq.s32.totalorder %s21, 3
      %p178 = por %p176, %p177
      %p179 = scmp.ne.s32.totalorder %s171, %s174
      %p180 = scmp.eq.s32.totalorder %s21, 0
      %p181 = por %p179, %p180
      %p182 = scmp.ne.s32.totalorder %s171, %s174
      %p183 = scmp.eq.s32.totalorder %s26, 3
      %p184 = por %p182, %p183
      %p185 = scmp.ne.s32.totalorder %s174, %s175
      %p186 = scmp.eq.s32.totalorder %s26, 0
      %p187 = por %p185, %p186
      %p188 = scmp.ne.s32.totalorder %s174, %s175
      %p189 = scmp.eq.s32.totalorder %s27, 3
      %p190 = por %p188, %p189
      %p192 = scmp.ne.s32.totalorder %s175, %s191
      %p193 = scmp.eq.s32.totalorder %s27, 0
      %p194 = por %p192, %p193
      %p195 = scmp.le.s32.totalorder 1, %s21
      %p196 = scmp.lt.s32.totalorder %s21, 5
      %p197 = pnand %p195, %p196
      %p198 = pneg %p197
      // Predicated region
      $region9: #{tpu_custom_call.1} parent=5 // pred_check
        _
      $region10: #{tpu_custom_call.1} parent=5 // pred_check_branch
        %200 = sbr.rel (%p197) target = $region12
      $region11: #{tpu_custom_call.1} parent=5 // pred_region
        %s201 = ssub.s32 %s21, 1
        // Predicated region
        $region13: #{tpu_custom_call.1} parent=11 // pred_check
          %p202 = pneg %p82
        $region14: #{tpu_custom_call.1} parent=11 // pred_check_branch
          %204 = sbr.rel (%p202) target = $region16
        $region15: #{tpu_custom_call.1} parent=11 // pred_region
          _
        $region16: #{tpu_custom_call.1} parent=11 // pred_fallthru
          _
        // Predicated region
        $region17: #{tpu_custom_call.1} parent=11 // pred_check
          %p205 = pneg %p103
        $region18: #{tpu_custom_call.1} parent=11 // pred_check_branch
          %207 = sbr.rel (%p205) target = $region20
        $region19: #{tpu_custom_call.1} parent=11 // pred_region
          _
        $region20: #{tpu_custom_call.1} parent=11 // pred_fallthru
          _
      $region12: #{tpu_custom_call.1} parent=5 // pred_fallthru
        _
      %p208 = scmp.lt.s32.totalorder %s21, 4
      // Predicated region
      $region21: #{tpu_custom_call.1} parent=5 // pred_check
        %p209 = pneg %p208
      $region22: #{tpu_custom_call.1} parent=5 // pred_check_branch
        %211 = sbr.rel (%p209) target = $region24
      $region23: #{tpu_custom_call.1} parent=5 // pred_region
        // Predicated region
        $region25: #{tpu_custom_call.1} parent=23 // pred_check
          %p212 = pneg %p55
        $region26: #{tpu_custom_call.1} parent=23 // pred_check_branch
          %214 = sbr.rel (%p212) target = $region28
        $region27: #{tpu_custom_call.1} parent=23 // pred_region
          %s215 = sand.u32 %s45, 1
          %s216 = scalar_lea.sflag [#allocation3], %s215
          %s217 = sand.u32 %s45, 1
          %s218 = smul.addr %s217, 168
          %s219 = scalar_lea.vmem [#allocation2], %s218
          %221 = vsyncadd %s216, 0
          %s222 = smul.addr %s28, 84
          %s223 = sadd.s32 %s29, %s222
          %s224 = smul.addr %s223, 4
          %s225 = scalar_lea.hbm %s0, %s224
          %s226 = sshll.u32 %s225, 4
          %s227 = int_to_ptr.hbm [resolvable:$true] %s226
          %s228 = sshll.u32 %s219, 4
          %s229 = int_to_ptr.vmem [resolvable:$true] %s228
          %234 = dma.hbm_to_vmem [thread:$0]  %s227, 2688, %s229, %s216, 128, 64, 4
        $region28: #{tpu_custom_call.1} parent=23 // pred_fallthru
          _
        // Predicated region
        $region29: #{tpu_custom_call.1} parent=23 // pred_check
          %p235 = pneg %p125
        $region30: #{tpu_custom_call.1} parent=23 // pred_check_branch
          %237 = sbr.rel (%p235) target = $region32
        $region31: #{tpu_custom_call.1} parent=23 // pred_region
          %s238 = sand.u32 %s115, 1
          %s239 = sand.u32 %s115, 1
          %s240 = smul.addr %s239, 32
          %s241 = scalar_lea.vmem [#allocation5], %s240
          %s242 = smul.addr %s28, 8
          %s243 = sadd.s32 %s29, %s242
          %s244 = smul.addr %s243, 8
          %s245 = scalar_lea.vmem %s3, %s244
          // Predicated region
          $region33: #{tpu_custom_call.1} parent=31 // pred_check
            _
          $region34: #{tpu_custom_call.1} parent=31 // pred_check_branch
            %247 = sbr.rel (0) target = $region36
          $region35: #{tpu_custom_call.1} parent=31 // pred_region
            // Predicated region
            $region37: #{tpu_custom_call.1} parent=35 // pred_check
              _
            $region38: #{tpu_custom_call.1} parent=35 // pred_check_branch
              %249 = sbr.rel (0) target = $region40
            $region39: #{tpu_custom_call.1} parent=35 // pred_region
              // Predicated region
              $region52: #{tpu_custom_call.1} parent=39 // pred_check
                _
              $region53: #{tpu_custom_call.1} parent=39 // pred_check_branch
                %271 = sbr.rel (0) target = $region55
              $region54: #{tpu_custom_call.1} parent=39 // pred_region
                loop: start=0, step=1, limit=1
                $region56: #{tpu_custom_call.1} parent=54 // loop_pre_header
                  _
                $region57: #{tpu_custom_call.1} parent=54 // loop_header
                  %s273 = sphi 0, %s277
                  %p274 = scmp.ge.s32.totalorder %s273, 1
                  %s278 = sphi %s245, %s245
                  %s279 = sphi %s241, %s241
                $region58: #{tpu_custom_call.1} parent=54 // loop_header_branch
                  %276 = sbr.rel (%p274) target = $region62
                $region59: #{tpu_custom_call.1} parent=54 // loop_body
                  %v280 = vld [vmem:[%s278] sm:$0xff]
                  %281 = vst [vmem:[%s279] sm:$0xff] %v280
                  %v282 = vld [vmem:[%s278 + $0x10] sm:$0xff]
                  %283 = vst [vmem:[%s279 + $0x8] sm:$0xff] %v282
                  %v284 = vld [vmem:[%s278 + $0x20] sm:$0xff]
                  %285 = vst [vmem:[%s279 + $0x10] sm:$0xff] %v284
                  %v286 = vld [vmem:[%s278 + $0x30] sm:$0xff]
                  %287 = vst [vmem:[%s279 + $0x18] sm:$0xff] %v286
                $region60: #{tpu_custom_call.1} parent=54 // loop_footer
                  %s277 = sadd.s32 1, %s273
                $region61: #{tpu_custom_call.1} parent=54 // loop_footer_branch
                  %272 = sbr.rel target = $region57
                $region62: #{tpu_custom_call.1} parent=54 // loop_exit
                  _
              $region55: #{tpu_custom_call.1} parent=39 // pred_fallthru
                _
              // Predicated region
              $region63: #{tpu_custom_call.1} parent=39 // pred_check
                _
              $region64: #{tpu_custom_call.1} parent=39 // pred_check_branch
                %289 = sbr.rel target = $region66
              $region65: #{tpu_custom_call.1} parent=39 // pred_region
                _
              $region66: #{tpu_custom_call.1} parent=39 // pred_fallthru
                _
            $region40: #{tpu_custom_call.1} parent=35 // pred_fallthru
              _
            // Predicated region
            $region41: #{tpu_custom_call.1} parent=35 // pred_check
              _
            $region42: #{tpu_custom_call.1} parent=35 // pred_check_branch
              %251 = sbr.rel target = $region44
            $region43: #{tpu_custom_call.1} parent=35 // pred_region
              %s253 = ssub.s32 256, 1
              loop: start=0, step=1, limit=1
              $region45: #{tpu_custom_call.1} parent=43 // loop_pre_header
                _
              $region46: #{tpu_custom_call.1} parent=43 // loop_header
                %s255 = sphi 0, %s259
                %p256 = scmp.ge.s32.totalorder %s255, 1
                %s260 = sphi %s245, %s245
                %s261 = sphi %s241, %s241
              $region47: #{tpu_custom_call.1} parent=43 // loop_header_branch
                %258 = sbr.rel (%p256) target = $region51
              $region48: #{tpu_custom_call.1} parent=43 // loop_body
                %v262 = vld [vmem:[%s260] sm:%s253]
                %263 = vst [vmem:[%s261] sm:%s253] %v262
                %v264 = vld [vmem:[%s260 + $0x10] sm:%s253]
                %265 = vst [vmem:[%s261 + $0x8] sm:%s253] %v264
                %v266 = vld [vmem:[%s260 + $0x20] sm:%s253]
                %267 = vst [vmem:[%s261 + $0x10] sm:%s253] %v266
                %v268 = vld [vmem:[%s260 + $0x30] sm:%s253]
                %269 = vst [vmem:[%s261 + $0x18] sm:%s253] %v268
              $region49: #{tpu_custom_call.1} parent=43 // loop_footer
                %s259 = sadd.s32 1, %s255
              $region50: #{tpu_custom_call.1} parent=43 // loop_footer_branch
                %254 = sbr.rel target = $region46
              $region51: #{tpu_custom_call.1} parent=43 // loop_exit
                _
            $region44: #{tpu_custom_call.1} parent=35 // pred_fallthru
              _
          $region36: #{tpu_custom_call.1} parent=31 // pred_fallthru
            _
          %290 = vnop
        $region32: #{tpu_custom_call.1} parent=23 // pred_fallthru
          _
      $region24: #{tpu_custom_call.1} parent=5 // pred_fallthru
        _
      %p291 = scmp.le.s32.totalorder 1, %s21
      %p292 = scmp.lt.s32.totalorder %s21, 5
      %p293 = pnand %p291, %p292
      %p294 = pneg %p293
      // Predicated region
      $region67: #{tpu_custom_call.1} parent=5 // pred_check
        _
      $region68: #{tpu_custom_call.1} parent=5 // pred_check_branch
        %296 = sbr.rel (%p293) target = $region70
      $region69: #{tpu_custom_call.1} parent=5 // pred_region
        %s297 = ssub.s32 %s21, 1
        %s298 = sand.u32 %s48, 1
        %s299 = scalar_lea.sflag [#allocation3], %s298
        %s300 = sand.u32 %s48, 1
        %s301 = smul.addr %s300, 168
        %s302 = scalar_lea.vmem [#allocation2], %s301
        // Predicated region
        $region71: #{tpu_custom_call.1} parent=69 // pred_check
          %p303 = pneg %p61
        $region72: #{tpu_custom_call.1} parent=69 // pred_check_branch
          %305 = sbr.rel (%p303) target = $region74
        $region73: #{tpu_custom_call.1} parent=69 // pred_region
          %307 = dma.done %s299, 2688
        $region74: #{tpu_custom_call.1} parent=69 // pred_fallthru
          _
        %s308 = sand.u32 %s118, 1
        %s309 = sand.u32 %s118, 1
        %s310 = smul.addr %s309, 32
        %s311 = scalar_lea.vmem [#allocation5], %s310
        // Predicated region
        $region75: #{tpu_custom_call.1} parent=69 // pred_check
          %p312 = pneg %p131
        $region76: #{tpu_custom_call.1} parent=69 // pred_check_branch
          %314 = sbr.rel (%p312) target = $region78
        $region77: #{tpu_custom_call.1} parent=69 // pred_region
          _
        $region78: #{tpu_custom_call.1} parent=69 // pred_fallthru
          _
        %s315 = sand.u32 %s48, 1
        %s316 = scalar_lea.sflag [#allocation3], %s315
        %s317 = sand.u32 %s48, 1
        %s318 = smul.addr %s317, 168
        %s319 = scalar_lea.vmem [#allocation2], %s318
        %p320 = pneg %p61
        %p321 = pneg %p58
        %p322 = pneg %p82
        %p323 = pneg %p79
        %p324 = pneg %p103
        %p325 = pneg %p100
        %s326 = sand.u32 %s118, 1
        %s327 = sand.u32 %s118, 1
        %s328 = smul.addr %s327, 32
        %s329 = scalar_lea.vmem [#allocation5], %s328
        %p330 = pneg %p131
        %p331 = pneg %p128
        %p332 = pneg %p159
        %p333 = pneg %p156
        %s334 = sand.u32 %s146, 1
        %s335 = scalar_lea.sflag [#allocation4], %s334
        %s336 = sand.u32 %s146, 1
        %s337 = smul.addr %s336, 32
        %s338 = scalar_lea.vmem [#allocation6], %s337
        %p339 = pneg %p187
        %p340 = pneg %p184
        %s341 = sand.u32 %s174, 1
        %s342 = scalar_lea.sflag [#allocation8], %s341
        %s343 = sand.u32 %s174, 1
        %s344 = smul.addr %s343, 32
        %s345 = scalar_lea.vmem [#allocation7], %s344
        %v347 = vld [vmem:[%s1] sm:$0xff]
        %v348 = vld [vmem:[%s1 + $0x8] sm:$0xf]
        %v349 = vld [vmem:[%s1 + $0xc] sm:$0xff]
        %v350 = vld [vmem:[%s1 + $0x14] sm:$0xf]
        %v351 = vld [vmem:[%s1 + $0x18] sm:$0xff]
        %v352 = vld [vmem:[%s1 + $0x20] sm:$0xf]
        %v353 = vld [vmem:[%s1 + $0x24] sm:$0xff]
        %v354 = vld [vmem:[%s1 + $0x2c] sm:$0xf]
        %v355 = vld [vmem:[%s1 + $0x30] sm:$0xff]
        %v356 = vld [vmem:[%s1 + $0x38] sm:$0xf]
        %v357 = vld [vmem:[%s1 + $0x3c] sm:$0xff]
        %v358 = vld [vmem:[%s1 + $0x44] sm:$0xf]
        %v359 = vld [vmem:[%s1 + $0x48] sm:$0xff]
        %v360 = vld [vmem:[%s1 + $0x50] sm:$0xf]
        %v361 = vld [vmem:[%s1 + $0x54] sm:$0xff]
        %v362 = vld [vmem:[%s1 + $0x5c] sm:$0xf]
        %v363 = vld [vmem:[%s1 + $0x60] sm:$0xff]
        %v364 = vld [vmem:[%s1 + $0x68] sm:$0xf]
        %v365 = vld [vmem:[%s1 + $0x6c] sm:$0xff]
        %v366 = vld [vmem:[%s1 + $0x74] sm:$0xf]
        %v367 = vld [vmem:[%s1 + $0x78] sm:$0xff]
        %v368 = vld [vmem:[%s1 + $0x80] sm:$0xf]
        %v369 = vld [vmem:[%s1 + $0x84] sm:$0xff]
        %v370 = vld [vmem:[%s1 + $0x8c] sm:$0xf]
        %v371 = vld [vmem:[%s1 + $0x90] sm:$0xff]
        %v372 = vld [vmem:[%s1 + $0x98] sm:$0xf]
        %v373 = vld [vmem:[%s1 + $0x9c] sm:$0xff]
        %v374 = vld [vmem:[%s1 + $0xa4] sm:$0xf]
        %v375 = vld [vmem:[%s1 + $0xa8] sm:$0xff]
        %v376 = vld [vmem:[%s1 + $0xb0] sm:$0xf]
        %v377 = vld [vmem:[%s1 + $0xb4] sm:$0xff]
        %v378 = vld [vmem:[%s1 + $0xbc] sm:$0xf]
        %v379 = vld [vmem:[%s302] sm:$0xf]
        %v380 = vld [vmem:[%s302 + $0x4] sm:$0xf]
        %v381 = vld [vmem:[%s302 + $0x8] sm:$0xf]
        %v382 = vld [vmem:[%s302 + $0xc] sm:$0xf]
        %v383 = vld [vmem:[%s302 + $0x10] sm:$0xf]
        %v384 = vld [vmem:[%s302 + $0x14] sm:$0xf]
        %v385 = vld [vmem:[%s302 + $0x18] sm:$0xf]
        %v386 = vld [vmem:[%s302 + $0x1c] sm:$0xf]
        %v387 = vld [vmem:[%s302 + $0x20] sm:$0xf]
        %v388 = vld [vmem:[%s302 + $0x24] sm:$0xf]
        %v389 = vld [vmem:[%s302 + $0x28] sm:$0xf]
        %v390 = vld [vmem:[%s302 + $0x2c] sm:$0xf]
        %v391 = vld [vmem:[%s302 + $0x30] sm:$0xf]
        %v392 = vld [vmem:[%s302 + $0x34] sm:$0xf]
        %v393 = vld [vmem:[%s302 + $0x38] sm:$0xf]
        %v394 = vld [vmem:[%s302 + $0x3c] sm:$0xf]
        %v395 = vld [vmem:[%s302 + $0x40] sm:$0xf]
        %v396 = vld [vmem:[%s302 + $0x44] sm:$0xf]
        %v397 = vld [vmem:[%s302 + $0x48] sm:$0xf]
        %v398 = vld [vmem:[%s302 + $0x4c] sm:$0xf]
        %v399 = vld [vmem:[%s302 + $0x50] sm:$0xf]
        %v400 = vld [vmem:[%s302 + $0x54] sm:$0xf]
        %v401 = vld [vmem:[%s302 + $0x58] sm:$0xf]
        %v402 = vld [vmem:[%s302 + $0x5c] sm:$0xf]
        %v403 = vld [vmem:[%s302 + $0x60] sm:$0xf]
        %v404 = vld [vmem:[%s302 + $0x64] sm:$0xf]
        %v405 = vld [vmem:[%s302 + $0x68] sm:$0xf]
        %v406 = vld [vmem:[%s302 + $0x6c] sm:$0xf]
        %v407 = vld [vmem:[%s302 + $0x70] sm:$0xf]
        %v408 = vld [vmem:[%s302 + $0x74] sm:$0xf]
        %v409 = vld [vmem:[%s302 + $0x78] sm:$0xf]
        %v410 = vld [vmem:[%s302 + $0x7c] sm:$0xf]
        %v411 = vld [vmem:[%s302 + $0x80] sm:$0xf]
        %v412 = vld [vmem:[%s302 + $0x84] sm:$0xf]
        %v413 = vld [vmem:[%s302 + $0x88] sm:$0xf]
        %v414 = vld [vmem:[%s302 + $0x8c] sm:$0xf]
        %v415 = vld [vmem:[%s302 + $0x90] sm:$0xf]
        %v416 = vld [vmem:[%s302 + $0x94] sm:$0xf]
        %v417 = vld [vmem:[%s302 + $0x98] sm:$0xf]
        %v418 = vld [vmem:[%s302 + $0x9c] sm:$0xf]
        %v419 = vld [vmem:[%s302 + $0xa0] sm:$0xf]
        %v420 = vld [vmem:[%s302 + $0xa4] sm:$0xf]
        %v421 = vld [vmem:[%s2] sm:$0xff]
        %v422 = vld [vmem:[%s2 + $0x8] sm:$0xff]
        %v423 = vld [vmem:[%s2 + $0x10] sm:$0xff]
        %v424 = vld [vmem:[%s2 + $0x18] sm:$0xff]
        %v425 = vld [vmem:[%s2 + $0x20] sm:$0xff]
        %v426 = vld [vmem:[%s2 + $0x28] sm:$0xff]
        %v427 = vld [vmem:[%s2 + $0x30] sm:$0xff]
        %v428 = vld [vmem:[%s2 + $0x38] sm:$0xff]
        %v429 = vld [vmem:[%s2 + $0x40] sm:$0xff]
        %v430 = vld [vmem:[%s2 + $0x48] sm:$0xff]
        %v431 = vld [vmem:[%s2 + $0x50] sm:$0xff]
        %v432 = vld [vmem:[%s2 + $0x58] sm:$0xff]
        %v433 = vld [vmem:[%s2 + $0x60] sm:$0xff]
        %v434 = vld [vmem:[%s2 + $0x68] sm:$0xff]
        %v435 = vld [vmem:[%s2 + $0x70] sm:$0xff]
        %v436 = vld [vmem:[%s2 + $0x78] sm:$0xff]
        %438 = vset.pattern.permute.xlu0 0
        %439 = vperm.xlu0 %438, %v421
        %v440 = vpop.permute.xlu0 %439
        %443 = vset.pattern.permute.xlu0 0
        %444 = vperm.xlu0 %443, %v422
        %v445 = vpop.permute.xlu0 %444
        %448 = vset.pattern.permute.xlu0 0
        %449 = vperm.xlu0 %448, %v423
        %v450 = vpop.permute.xlu0 %449
        %453 = vset.pattern.permute.xlu0 0
        %454 = vperm.xlu0 %453, %v424
        %v455 = vpop.permute.xlu0 %454
        %458 = vset.pattern.permute.xlu0 0
        %459 = vperm.xlu0 %458, %v425
        %v460 = vpop.permute.xlu0 %459
        %463 = vset.pattern.permute.xlu0 0
        %464 = vperm.xlu0 %463, %v426
        %v465 = vpop.permute.xlu0 %464
        %468 = vset.pattern.permute.xlu0 0
        %469 = vperm.xlu0 %468, %v427
        %v470 = vpop.permute.xlu0 %469
        %473 = vset.pattern.permute.xlu0 0
        %474 = vperm.xlu0 %473, %v428
        %v475 = vpop.permute.xlu0 %474
        %478 = vset.pattern.permute.xlu0 0
        %479 = vperm.xlu0 %478, %v429
        %v480 = vpop.permute.xlu0 %479
        %483 = vset.pattern.permute.xlu0 0
        %484 = vperm.xlu0 %483, %v430
        %v485 = vpop.permute.xlu0 %484
        %488 = vset.pattern.permute.xlu0 0
        %489 = vperm.xlu0 %488, %v431
        %v490 = vpop.permute.xlu0 %489
        %493 = vset.pattern.permute.xlu0 0
        %494 = vperm.xlu0 %493, %v432
        %v495 = vpop.permute.xlu0 %494
        %498 = vset.pattern.permute.xlu0 0
        %499 = vperm.xlu0 %498, %v433
        %v500 = vpop.permute.xlu0 %499
        %503 = vset.pattern.permute.xlu0 0
        %504 = vperm.xlu0 %503, %v434
        %v505 = vpop.permute.xlu0 %504
        %508 = vset.pattern.permute.xlu0 0
        %509 = vperm.xlu0 %508, %v435
        %v510 = vpop.permute.xlu0 %509
        %513 = vset.pattern.permute.xlu0 0
        %514 = vperm.xlu0 %513, %v436
        %v515 = vpop.permute.xlu0 %514
        %v549 = vunpack.c.l.b16 %v347
        %v550 = vunpack.c.h.b16 %v347
        %v551 = vunpack.c.l.b16 %v348
        %v552 = vunpack.c.l.b16 %v349
        %v553 = vunpack.c.h.b16 %v349
        %v554 = vunpack.c.l.b16 %v350
        %v555 = vunpack.c.l.b16 %v351
        %v556 = vunpack.c.h.b16 %v351
        %v557 = vunpack.c.l.b16 %v352
        %v558 = vunpack.c.l.b16 %v353
        %v559 = vunpack.c.h.b16 %v353
        %v560 = vunpack.c.l.b16 %v354
        %v561 = vunpack.c.l.b16 %v355
        %v562 = vunpack.c.h.b16 %v355
        %v563 = vunpack.c.l.b16 %v356
        %v564 = vunpack.c.l.b16 %v357
        %v565 = vunpack.c.h.b16 %v357
        %v566 = vunpack.c.l.b16 %v358
        %v567 = vunpack.c.l.b16 %v359
        %v568 = vunpack.c.h.b16 %v359
        %v569 = vunpack.c.l.b16 %v360
        %v570 = vunpack.c.l.b16 %v361
        %v571 = vunpack.c.h.b16 %v361
        %v572 = vunpack.c.l.b16 %v362
        %v573 = vunpack.c.l.b16 %v363
        %v574 = vunpack.c.h.b16 %v363
        %v575 = vunpack.c.l.b16 %v364
        %v576 = vunpack.c.l.b16 %v365
        %v577 = vunpack.c.h.b16 %v365
        %v578 = vunpack.c.l.b16 %v366
        %v579 = vunpack.c.l.b16 %v367
        %v580 = vunpack.c.h.b16 %v367
        %v581 = vunpack.c.l.b16 %v368
        %v582 = vunpack.c.l.b16 %v369
        %v583 = vunpack.c.h.b16 %v369
        %v584 = vunpack.c.l.b16 %v370
        %v585 = vunpack.c.l.b16 %v371
        %v586 = vunpack.c.h.b16 %v371
        %v587 = vunpack.c.l.b16 %v372
        %v588 = vunpack.c.l.b16 %v373
        %v589 = vunpack.c.h.b16 %v373
        %v590 = vunpack.c.l.b16 %v374
        %v591 = vunpack.c.l.b16 %v375
        %v592 = vunpack.c.h.b16 %v375
        %v593 = vunpack.c.l.b16 %v376
        %v594 = vunpack.c.l.b16 %v377
        %v595 = vunpack.c.h.b16 %v377
        %v596 = vunpack.c.l.b16 %v378
        %v597 = vpack.c.b16 %v552, %v549
        %v598 = vpack.c.b16 %v553, %v550
        %v599 = vpack.c.b16 %v554, %v551
        %v600 = vpack.c.b16 %v558, %v555
        %v601 = vpack.c.b16 %v559, %v556
        %v602 = vpack.c.b16 %v560, %v557
        %v603 = vpack.c.b16 %v564, %v561
        %v604 = vpack.c.b16 %v565, %v562
        %v605 = vpack.c.b16 %v566, %v563
        %v606 = vpack.c.b16 %v570, %v567
        %v607 = vpack.c.b16 %v571, %v568
        %v608 = vpack.c.b16 %v572, %v569
        %v609 = vpack.c.b16 %v576, %v573
        %v610 = vpack.c.b16 %v577, %v574
        %v611 = vpack.c.b16 %v578, %v575
        %v612 = vpack.c.b16 %v582, %v579
        %v613 = vpack.c.b16 %v583, %v580
        %v614 = vpack.c.b16 %v584, %v581
        %v615 = vpack.c.b16 %v588, %v585
        %v616 = vpack.c.b16 %v589, %v586
        %v617 = vpack.c.b16 %v590, %v587
        %v618 = vpack.c.b16 %v594, %v591
        %v619 = vpack.c.b16 %v595, %v592
        %v620 = vpack.c.b16 %v596, %v593
        %v679 = vunpack.c.l.b16 %v379
        %v680 = vunpack.c.l.b16 %v380
        %v681 = vunpack.c.l.b16 %v381
        %v682 = vunpack.c.l.b16 %v382
        %v683 = vunpack.c.l.b16 %v383
        %v684 = vunpack.c.l.b16 %v384
        %v685 = vunpack.c.l.b16 %v385
        %v686 = vunpack.c.l.b16 %v386
        %v687 = vunpack.c.l.b16 %v387
        %v688 = vunpack.c.l.b16 %v388
        %v689 = vunpack.c.l.b16 %v389
        %v690 = vunpack.c.l.b16 %v390
        %v691 = vunpack.c.l.b16 %v391
        %v692 = vunpack.c.l.b16 %v392
        %v693 = vunpack.c.l.b16 %v393
        %v694 = vunpack.c.l.b16 %v394
        %v695 = vunpack.c.l.b16 %v395
        %v696 = vunpack.c.l.b16 %v396
        %v697 = vunpack.c.l.b16 %v397
        %v698 = vunpack.c.l.b16 %v398
        %v699 = vunpack.c.l.b16 %v399
        %v700 = vunpack.c.l.b16 %v400
        %v701 = vunpack.c.l.b16 %v401
        %v702 = vunpack.c.l.b16 %v402
        %v703 = vunpack.c.l.b16 %v403
        %v704 = vunpack.c.l.b16 %v404
        %v705 = vunpack.c.l.b16 %v405
        %v706 = vunpack.c.l.b16 %v406
        %v707 = vunpack.c.l.b16 %v407
        %v708 = vunpack.c.l.b16 %v408
        %v709 = vunpack.c.l.b16 %v409
        %v710 = vunpack.c.l.b16 %v410
        %v711 = vunpack.c.l.b16 %v411
        %v712 = vunpack.c.l.b16 %v412
        %v713 = vunpack.c.l.b16 %v413
        %v714 = vunpack.c.l.b16 %v414
        %v715 = vunpack.c.l.b16 %v415
        %v716 = vunpack.c.l.b16 %v416
        %v717 = vunpack.c.l.b16 %v417
        %v718 = vunpack.c.l.b16 %v418
        %v719 = vunpack.c.l.b16 %v419
        %v720 = vunpack.c.l.b16 %v420
        %v721 = vpack.c.b16 %v680, %v679
        %v722 = vpack.c.b16 %v682, %v681
        %v723 = vpack.c.b16 %v684, %v683
        %v724 = vpack.c.b16 %v686, %v685
        %v725 = vpack.c.b16 %v688, %v687
        %v726 = vpack.c.b16 %v690, %v689
        %v727 = vpack.c.b16 %v692, %v691
        %v728 = vpack.c.b16 %v694, %v693
        %v729 = vpack.c.b16 %v696, %v695
        %v730 = vpack.c.b16 %v698, %v697
        %v731 = vpack.c.b16 %v700, %v699
        %v732 = vpack.c.b16 %v702, %v701
        %v733 = vpack.c.b16 %v704, %v703
        %v734 = vpack.c.b16 %v706, %v705
        %v735 = vpack.c.b16 %v708, %v707
        %v736 = vpack.c.b16 %v710, %v709
        %v737 = vpack.c.b16 %v712, %v711
        %v738 = vpack.c.b16 %v714, %v713
        %v739 = vpack.c.b16 %v716, %v715
        %v740 = vpack.c.b16 %v718, %v717
        %v741 = vpack.c.b16 %v720, %v719
        %vm763 = vcmask 654336
        %v765 = vsel %vm763, %v599, 0
        %v768 = vsel %vm763, %v602, 0
        %v771 = vsel %vm763, %v605, 0
        %v774 = vsel %vm763, %v608, 0
        %v777 = vsel %vm763, %v611, 0
        %v780 = vsel %vm763, %v614, 0
        %v783 = vsel %vm763, %v617, 0
        %v786 = vsel %vm763, %v620, 0
        %788 = vmatpush.bf16.msra.mxu0 %v728
        %789 = vmatpush.bf16.msra.mxu0 %v727
        %790 = vmatpush.bf16.msra.mxu0 %v726
        %791 = vmatpush.bf16.msra.mxu0 %v725
        %792 = vmatpush.bf16.msra.mxu0 %v724
        %793 = vmatpush.bf16.msra.mxu0 %v723
        %794 = vmatpush.bf16.msra.mxu0 %v722
        %795 = vmatpush.bf16.msra.mxu0 %v721
        %796 = vmatmul.bf16.gmra.mxu0 %v597
        %v797 = vpop.f32.mrf.mxu0
        %v798 = vadd.f32 %v440, %v797
        %v799 = vpop.f32.mrf.mxu0
        %v800 = vadd.f32 %v445, %v799
        %801 = vmatmul.bf16.gmra.mxu0 %v600
        %v802 = vpop.f32.mrf.mxu0
        %v803 = vadd.f32 %v450, %v802
        %v804 = vpop.f32.mrf.mxu0
        %v805 = vadd.f32 %v455, %v804
        %806 = vmatmul.bf16.gmra.mxu0 %v603
        %v807 = vpop.f32.mrf.mxu0
        %v808 = vadd.f32 %v460, %v807
        %v809 = vpop.f32.mrf.mxu0
        %v810 = vadd.f32 %v465, %v809
        %811 = vmatmul.bf16.gmra.mxu0 %v606
        %v812 = vpop.f32.mrf.mxu0
        %v813 = vadd.f32 %v470, %v812
        %v814 = vpop.f32.mrf.mxu0
        %v815 = vadd.f32 %v475, %v814
        %816 = vmatmul.bf16.gmra.mxu0 %v609
        %v817 = vpop.f32.mrf.mxu0
        %v818 = vadd.f32 %v480, %v817
        %v819 = vpop.f32.mrf.mxu0
        %v820 = vadd.f32 %v485, %v819
        %821 = vmatmul.bf16.gmra.mxu0 %v612
        %v822 = vpop.f32.mrf.mxu0
        %v823 = vadd.f32 %v490, %v822
        %v824 = vpop.f32.mrf.mxu0
        %v825 = vadd.f32 %v495, %v824
        %826 = vmatmul.bf16.gmra.mxu0 %v615
        %v827 = vpop.f32.mrf.mxu0
        %v828 = vadd.f32 %v500, %v827
        %v829 = vpop.f32.mrf.mxu0
        %v830 = vadd.f32 %v505, %v829
        %831 = vmatmul.bf16.gmra.mxu0 %v618
        %v832 = vpop.f32.mrf.mxu0
        %v833 = vadd.f32 %v510, %v832
        %v834 = vpop.f32.mrf.mxu0
        %v835 = vadd.f32 %v515, %v834
        %836 = vdwg.mxu0
        %837 = vmatpush.bf16.msra.mxu0 %v736
        %838 = vmatpush.bf16.msra.mxu0 %v735
        %839 = vmatpush.bf16.msra.mxu0 %v734
        %840 = vmatpush.bf16.msra.mxu0 %v733
        %841 = vmatpush.bf16.msra.mxu0 %v732
        %842 = vmatpush.bf16.msra.mxu0 %v731
        %843 = vmatpush.bf16.msra.mxu0 %v730
        %844 = vmatpush.bf16.msra.mxu0 %v729
        %845 = vmatmul.bf16.gmra.mxu0 %v598
        %v846 = vpop.f32.mrf.mxu0
        %v847 = vadd.f32 %v798, %v846
        %v848 = vpop.f32.mrf.mxu0
        %v849 = vadd.f32 %v800, %v848
        %850 = vmatmul.bf16.gmra.mxu0 %v601
        %v851 = vpop.f32.mrf.mxu0
        %v852 = vadd.f32 %v803, %v851
        %v853 = vpop.f32.mrf.mxu0
        %v854 = vadd.f32 %v805, %v853
        %855 = vmatmul.bf16.gmra.mxu0 %v604
        %v856 = vpop.f32.mrf.mxu0
        %v857 = vadd.f32 %v808, %v856
        %v858 = vpop.f32.mrf.mxu0
        %v859 = vadd.f32 %v810, %v858
        %860 = vmatmul.bf16.gmra.mxu0 %v607
        %v861 = vpop.f32.mrf.mxu0
        %v862 = vadd.f32 %v813, %v861
        %v863 = vpop.f32.mrf.mxu0
        %v864 = vadd.f32 %v815, %v863
        %865 = vmatmul.bf16.gmra.mxu0 %v610
        %v866 = vpop.f32.mrf.mxu0
        %v867 = vadd.f32 %v818, %v866
        %v868 = vpop.f32.mrf.mxu0
        %v869 = vadd.f32 %v820, %v868
        %870 = vmatmul.bf16.gmra.mxu0 %v613
        %v871 = vpop.f32.mrf.mxu0
        %v872 = vadd.f32 %v823, %v871
        %v873 = vpop.f32.mrf.mxu0
        %v874 = vadd.f32 %v825, %v873
        %875 = vmatmul.bf16.gmra.mxu0 %v616
        %v876 = vpop.f32.mrf.mxu0
        %v877 = vadd.f32 %v828, %v876
        %v878 = vpop.f32.mrf.mxu0
        %v879 = vadd.f32 %v830, %v878
        %880 = vmatmul.bf16.gmra.mxu0 %v619
        %v881 = vpop.f32.mrf.mxu0
        %v882 = vadd.f32 %v833, %v881
        %v883 = vpop.f32.mrf.mxu0
        %v884 = vadd.f32 %v835, %v883
        %885 = vdwg.mxu0
        %886 = vmatpush.bf16.msra.mxu0 0
        %887 = vmatpush.bf16.msra.mxu0 0
        %888 = vmatpush.bf16.msra.mxu0 0
        %889 = vmatpush.bf16.msra.mxu0 %v741
        %890 = vmatpush.bf16.msra.mxu0 %v740
        %891 = vmatpush.bf16.msra.mxu0 %v739
        %892 = vmatpush.bf16.msra.mxu0 %v738
        %893 = vmatpush.bf16.msra.mxu0 %v737
        %894 = vmatmul.bf16.gmra.mxu0 %v765
        %v895 = vpop.f32.mrf.mxu0
        %v896 = vadd.f32 %v847, %v895
        %v897 = vpop.f32.mrf.mxu0
        %v898 = vadd.f32 %v849, %v897
        %899 = vmatmul.bf16.gmra.mxu0 %v768
        %v900 = vpop.f32.mrf.mxu0
        %v901 = vadd.f32 %v852, %v900
        %v902 = vpop.f32.mrf.mxu0
        %v903 = vadd.f32 %v854, %v902
        %904 = vmatmul.bf16.gmra.mxu0 %v771
        %v905 = vpop.f32.mrf.mxu0
        %v906 = vadd.f32 %v857, %v905
        %v907 = vpop.f32.mrf.mxu0
        %v908 = vadd.f32 %v859, %v907
        %909 = vmatmul.bf16.gmra.mxu0 %v774
        %v910 = vpop.f32.mrf.mxu0
        %v911 = vadd.f32 %v862, %v910
        %v912 = vpop.f32.mrf.mxu0
        %v913 = vadd.f32 %v864, %v912
        %914 = vmatmul.bf16.gmra.mxu0 %v777
        %v915 = vpop.f32.mrf.mxu0
        %v916 = vadd.f32 %v867, %v915
        %v917 = vpop.f32.mrf.mxu0
        %v918 = vadd.f32 %v869, %v917
        %919 = vmatmul.bf16.gmra.mxu0 %v780
        %v920 = vpop.f32.mrf.mxu0
        %v921 = vadd.f32 %v872, %v920
        %v922 = vpop.f32.mrf.mxu0
        %v923 = vadd.f32 %v874, %v922
        %924 = vmatmul.bf16.gmra.mxu0 %v783
        %v925 = vpop.f32.mrf.mxu0
        %v926 = vadd.f32 %v877, %v925
        %v927 = vpop.f32.mrf.mxu0
        %v928 = vadd.f32 %v879, %v927
        %929 = vmatmul.bf16.gmra.mxu0 %v786
        %v930 = vpop.f32.mrf.mxu0
        %v931 = vadd.f32 %v882, %v930
        %v932 = vpop.f32.mrf.mxu0
        %v933 = vadd.f32 %v884, %v932
        %934 = vdwg.mxu0
        %v935 = vxor.u32 %v896, 2147483648
        %v936 = vxor.u32 %v898, 2147483648
        %v937 = vxor.u32 %v901, 2147483648
        %v938 = vxor.u32 %v903, 2147483648
        %v939 = vmul.f32 %v935, 1.442695
        %v940 = vpow.pop %v939
        %v941 = vmul.f32 %v936, 1.442695
        %v942 = vpow.pop %v941
        %v943 = vmul.f32 %v937, 1.442695
        %v944 = vpow.pop %v943
        %v945 = vmul.f32 %v938, 1.442695
        %v946 = vpow.pop %v945
        %v947 = vadd.f32 %v940, 1.0
        %v948 = vadd.f32 %v942, 1.0
        %v949 = vadd.f32 %v944, 1.0
        %v950 = vadd.f32 %v946, 1.0
        %v951 = vrcp.pop %v947
        %v952 = vmul.f32 %v947, %v951
        %v953 = vsub.f32 1.0, %v952
        %v954 = vmul.f32 %v951, %v953
        %v955 = vadd.f32 %v951, %v954
        %vm956 = vweird.f32 %v947
        %vm957 = vweird.f32 %v951
        %vm958 = vmor %vm956, %vm957
        %v959 = vsel %vm958, %v951, %v955
        %v960 = vand.u32 2147483647, %v947
        %vm961 = vcmp.eq.f32.partialorder %v960, 8.507059e+37
        %v962 = vand.u32 %v947, 2147483648
        %v963 = vor.u32 1.1754944e-38, %v962
        %v964 = vsel %vm961, %v963, %v959
        %v965 = vmul.f32 1.0, %v964
        %v966 = vrcp.pop %v948
        %v967 = vmul.f32 %v948, %v966
        %v968 = vsub.f32 1.0, %v967
        %v969 = vmul.f32 %v966, %v968
        %v970 = vadd.f32 %v966, %v969
        %vm971 = vweird.f32 %v948
        %vm972 = vweird.f32 %v966
        %vm973 = vmor %vm971, %vm972
        %v974 = vsel %vm973, %v966, %v970
        %v975 = vand.u32 2147483647, %v948
        %vm976 = vcmp.eq.f32.partialorder %v975, 8.507059e+37
        %v977 = vand.u32 %v948, 2147483648
        %v978 = vor.u32 1.1754944e-38, %v977
        %v979 = vsel %vm976, %v978, %v974
        %v980 = vmul.f32 1.0, %v979
        %v981 = vrcp.pop %v949
        %v982 = vmul.f32 %v949, %v981
        %v983 = vsub.f32 1.0, %v982
        %v984 = vmul.f32 %v981, %v983
        %v985 = vadd.f32 %v981, %v984
        %vm986 = vweird.f32 %v949
        %vm987 = vweird.f32 %v981
        %vm988 = vmor %vm986, %vm987
        %v989 = vsel %vm988, %v981, %v985
        %v990 = vand.u32 2147483647, %v949
        %vm991 = vcmp.eq.f32.partialorder %v990, 8.507059e+37
        %v992 = vand.u32 %v949, 2147483648
        %v993 = vor.u32 1.1754944e-38, %v992
        %v994 = vsel %vm991, %v993, %v989
        %v995 = vmul.f32 1.0, %v994
        %v996 = vrcp.pop %v950
        %v997 = vmul.f32 %v950, %v996
        %v998 = vsub.f32 1.0, %v997
        %v999 = vmul.f32 %v996, %v998
        %v1000 = vadd.f32 %v996, %v999
        %vm1001 = vweird.f32 %v950
        %vm1002 = vweird.f32 %v996
        %vm1003 = vmor %vm1001, %vm1002
        %v1004 = vsel %vm1003, %v996, %v1000
        %v1005 = vand.u32 2147483647, %v950
        %vm1006 = vcmp.eq.f32.partialorder %v1005, 8.507059e+37
        %v1007 = vand.u32 %v950, 2147483648
        %v1008 = vor.u32 1.1754944e-38, %v1007
        %v1009 = vsel %vm1006, %v1008, %v1004
        %v1010 = vmul.f32 1.0, %v1009
        %v1011 = vxor.u32 %v906, 2147483648
        %v1012 = vxor.u32 %v908, 2147483648
        %v1013 = vxor.u32 %v911, 2147483648
        %v1014 = vxor.u32 %v913, 2147483648
        %v1015 = vmul.f32 %v1011, 1.442695
        %v1016 = vpow.pop %v1015
        %v1017 = vmul.f32 %v1012, 1.442695
        %v1018 = vpow.pop %v1017
        %v1019 = vmul.f32 %v1013, 1.442695
        %v1020 = vpow.pop %v1019
        %v1021 = vmul.f32 %v1014, 1.442695
        %v1022 = vpow.pop %v1021
        %v1023 = vadd.f32 %v1016, 1.0
        %v1024 = vadd.f32 %v1018, 1.0
        %v1025 = vadd.f32 %v1020, 1.0
        %v1026 = vadd.f32 %v1022, 1.0
        %v1027 = vrcp.pop %v1023
        %v1028 = vmul.f32 %v1023, %v1027
        %v1029 = vsub.f32 1.0, %v1028
        %v1030 = vmul.f32 %v1027, %v1029
        %v1031 = vadd.f32 %v1027, %v1030
        %vm1032 = vweird.f32 %v1023
        %vm1033 = vweird.f32 %v1027
        %vm1034 = vmor %vm1032, %vm1033
        %v1035 = vsel %vm1034, %v1027, %v1031
        %v1036 = vand.u32 2147483647, %v1023
        %vm1037 = vcmp.eq.f32.partialorder %v1036, 8.507059e+37
        %v1038 = vand.u32 %v1023, 2147483648
        %v1039 = vor.u32 1.1754944e-38, %v1038
        %v1040 = vsel %vm1037, %v1039, %v1035
        %v1041 = vmul.f32 1.0, %v1040
        %v1042 = vrcp.pop %v1024
        %v1043 = vmul.f32 %v1024, %v1042
        %v1044 = vsub.f32 1.0, %v1043
        %v1045 = vmul.f32 %v1042, %v1044
        %v1046 = vadd.f32 %v1042, %v1045
        %vm1047 = vweird.f32 %v1024
        %vm1048 = vweird.f32 %v1042
        %vm1049 = vmor %vm1047, %vm1048
        %v1050 = vsel %vm1049, %v1042, %v1046
        %v1051 = vand.u32 2147483647, %v1024
        %vm1052 = vcmp.eq.f32.partialorder %v1051, 8.507059e+37
        %v1053 = vand.u32 %v1024, 2147483648
        %v1054 = vor.u32 1.1754944e-38, %v1053
        %v1055 = vsel %vm1052, %v1054, %v1050
        %v1056 = vmul.f32 1.0, %v1055
        %v1057 = vrcp.pop %v1025
        %v1058 = vmul.f32 %v1025, %v1057
        %v1059 = vsub.f32 1.0, %v1058
        %v1060 = vmul.f32 %v1057, %v1059
        %v1061 = vadd.f32 %v1057, %v1060
        %vm1062 = vweird.f32 %v1025
        %vm1063 = vweird.f32 %v1057
        %vm1064 = vmor %vm1062, %vm1063
        %v1065 = vsel %vm1064, %v1057, %v1061
        %v1066 = vand.u32 2147483647, %v1025
        %vm1067 = vcmp.eq.f32.partialorder %v1066, 8.507059e+37
        %v1068 = vand.u32 %v1025, 2147483648
        %v1069 = vor.u32 1.1754944e-38, %v1068
        %v1070 = vsel %vm1067, %v1069, %v1065
        %v1071 = vmul.f32 1.0, %v1070
        %v1072 = vrcp.pop %v1026
        %v1073 = vmul.f32 %v1026, %v1072
        %v1074 = vsub.f32 1.0, %v1073
        %v1075 = vmul.f32 %v1072, %v1074
        %v1076 = vadd.f32 %v1072, %v1075
        %vm1077 = vweird.f32 %v1026
        %vm1078 = vweird.f32 %v1072
        %vm1079 = vmor %vm1077, %vm1078
        %v1080 = vsel %vm1079, %v1072, %v1076
        %v1081 = vand.u32 2147483647, %v1026
        %vm1082 = vcmp.eq.f32.partialorder %v1081, 8.507059e+37
        %v1083 = vand.u32 %v1026, 2147483648
        %v1084 = vor.u32 1.1754944e-38, %v1083
        %v1085 = vsel %vm1082, %v1084, %v1080
        %v1086 = vmul.f32 1.0, %v1085
        %v1087 = vxor.u32 %v916, 2147483648
        %v1088 = vxor.u32 %v918, 2147483648
        %v1089 = vxor.u32 %v921, 2147483648
        %v1090 = vxor.u32 %v923, 2147483648
        %v1091 = vmul.f32 %v1087, 1.442695
        %v1092 = vpow.pop %v1091
        %v1093 = vmul.f32 %v1088, 1.442695
        %v1094 = vpow.pop %v1093
        %v1095 = vmul.f32 %v1089, 1.442695
        %v1096 = vpow.pop %v1095
        %v1097 = vmul.f32 %v1090, 1.442695
        %v1098 = vpow.pop %v1097
        %v1099 = vadd.f32 %v1092, 1.0
        %v1100 = vadd.f32 %v1094, 1.0
        %v1101 = vadd.f32 %v1096, 1.0
        %v1102 = vadd.f32 %v1098, 1.0
        %v1103 = vrcp.pop %v1099
        %v1104 = vmul.f32 %v1099, %v1103
        %v1105 = vsub.f32 1.0, %v1104
        %v1106 = vmul.f32 %v1103, %v1105
        %v1107 = vadd.f32 %v1103, %v1106
        %vm1108 = vweird.f32 %v1099
        %vm1109 = vweird.f32 %v1103
        %vm1110 = vmor %vm1108, %vm1109
        %v1111 = vsel %vm1110, %v1103, %v1107
        %v1112 = vand.u32 2147483647, %v1099
        %vm1113 = vcmp.eq.f32.partialorder %v1112, 8.507059e+37
        %v1114 = vand.u32 %v1099, 2147483648
        %v1115 = vor.u32 1.1754944e-38, %v1114
        %v1116 = vsel %vm1113, %v1115, %v1111
        %v1117 = vmul.f32 1.0, %v1116
        %v1118 = vrcp.pop %v1100
        %v1119 = vmul.f32 %v1100, %v1118
        %v1120 = vsub.f32 1.0, %v1119
        %v1121 = vmul.f32 %v1118, %v1120
        %v1122 = vadd.f32 %v1118, %v1121
        %vm1123 = vweird.f32 %v1100
        %vm1124 = vweird.f32 %v1118
        %vm1125 = vmor %vm1123, %vm1124
        %v1126 = vsel %vm1125, %v1118, %v1122
        %v1127 = vand.u32 2147483647, %v1100
        %vm1128 = vcmp.eq.f32.partialorder %v1127, 8.507059e+37
        %v1129 = vand.u32 %v1100, 2147483648
        %v1130 = vor.u32 1.1754944e-38, %v1129
        %v1131 = vsel %vm1128, %v1130, %v1126
        %v1132 = vmul.f32 1.0, %v1131
        %v1133 = vrcp.pop %v1101
        %v1134 = vmul.f32 %v1101, %v1133
        %v1135 = vsub.f32 1.0, %v1134
        %v1136 = vmul.f32 %v1133, %v1135
        %v1137 = vadd.f32 %v1133, %v1136
        %vm1138 = vweird.f32 %v1101
        %vm1139 = vweird.f32 %v1133
        %vm1140 = vmor %vm1138, %vm1139
        %v1141 = vsel %vm1140, %v1133, %v1137
        %v1142 = vand.u32 2147483647, %v1101
        %vm1143 = vcmp.eq.f32.partialorder %v1142, 8.507059e+37
        %v1144 = vand.u32 %v1101, 2147483648
        %v1145 = vor.u32 1.1754944e-38, %v1144
        %v1146 = vsel %vm1143, %v1145, %v1141
        %v1147 = vmul.f32 1.0, %v1146
        %v1148 = vrcp.pop %v1102
        %v1149 = vmul.f32 %v1102, %v1148
        %v1150 = vsub.f32 1.0, %v1149
        %v1151 = vmul.f32 %v1148, %v1150
        %v1152 = vadd.f32 %v1148, %v1151
        %vm1153 = vweird.f32 %v1102
        %vm1154 = vweird.f32 %v1148
        %vm1155 = vmor %vm1153, %vm1154
        %v1156 = vsel %vm1155, %v1148, %v1152
        %v1157 = vand.u32 2147483647, %v1102
        %vm1158 = vcmp.eq.f32.partialorder %v1157, 8.507059e+37
        %v1159 = vand.u32 %v1102, 2147483648
        %v1160 = vor.u32 1.1754944e-38, %v1159
        %v1161 = vsel %vm1158, %v1160, %v1156
        %v1162 = vmul.f32 1.0, %v1161
        %v1163 = vtanh.pop %v926
        %v1164 = vtanh.pop %v928
        %v1165 = vtanh.pop %v931
        %v1166 = vtanh.pop %v933
        %v1167 = vld [vmem:[%s311] sm:$0xff]
        %v1168 = vld [vmem:[%s311 + $0x8] sm:$0xff]
        %v1169 = vld [vmem:[%s311 + $0x10] sm:$0xff]
        %v1170 = vld [vmem:[%s311 + $0x18] sm:$0xff]
        %v1171 = vmul.f32 %v1041, %v1167
        %v1172 = vmul.f32 %v1056, %v1168
        %v1173 = vmul.f32 %v1071, %v1169
        %v1174 = vmul.f32 %v1086, %v1170
        %v1175 = vmul.f32 %v965, %v1163
        %v1176 = vmul.f32 %v980, %v1164
        %v1177 = vmul.f32 %v995, %v1165
        %v1178 = vmul.f32 %v1010, %v1166
        %v1179 = vadd.f32 %v1171, %v1175
        %v1180 = vadd.f32 %v1172, %v1176
        %v1181 = vadd.f32 %v1173, %v1177
        %v1182 = vadd.f32 %v1174, %v1178
        %v1183 = vtanh.pop %v1179
        %v1184 = vtanh.pop %v1180
        %v1185 = vtanh.pop %v1181
        %v1186 = vtanh.pop %v1182
        %v1187 = vmul.f32 %v1117, %v1183
        %v1188 = vmul.f32 %v1132, %v1184
        %v1189 = vmul.f32 %v1147, %v1185
        %v1190 = vmul.f32 %v1162, %v1186
        %1191 = vst [vmem:[%s345] sm:$0xff] %v1179
        %1192 = vst [vmem:[%s345 + $0x8] sm:$0xff] %v1180
        %1193 = vst [vmem:[%s345 + $0x10] sm:$0xff] %v1181
        %1194 = vst [vmem:[%s345 + $0x18] sm:$0xff] %v1182
        %1195 = vst [vmem:[%s338] sm:$0xff] %v1187
        %1196 = vst [vmem:[%s338 + $0x8] sm:$0xff] %v1188
        %1197 = vst [vmem:[%s338 + $0x10] sm:$0xff] %v1189
        %1198 = vst [vmem:[%s338 + $0x18] sm:$0xff] %v1190
        %s1199 = sand.u32 %s146, 1
        %s1200 = scalar_lea.sflag [#allocation4], %s1199
        %s1201 = sand.u32 %s146, 1
        %s1202 = smul.addr %s1201, 32
        %s1203 = scalar_lea.vmem [#allocation6], %s1202
        %s1204 = sand.u32 %s174, 1
        %s1205 = scalar_lea.sflag [#allocation8], %s1204
        %s1206 = sand.u32 %s174, 1
        %s1207 = smul.addr %s1206, 32
        %s1208 = scalar_lea.vmem [#allocation7], %s1207
        // Predicated region
        $region79: #{tpu_custom_call.1} parent=69 // pred_check
          %p1209 = pneg %p156
        $region80: #{tpu_custom_call.1} parent=69 // pred_check_branch
          %1211 = sbr.rel (%p1209) target = $region82
        $region81: #{tpu_custom_call.1} parent=69 // pred_region
          %1213 = vsyncadd %s1200, 0
          %s1214 = smul.addr %s30, 8
          %s1215 = sadd.s32 %s31, %s1214
          %s1216 = smul.addr %s1215, 8
          %s1217 = scalar_lea.hbm %s4, %s1216
          %s1218 = sshll.u32 %s1203, 4
          %s1219 = int_to_ptr.vmem [resolvable:$true] %s1218
          %s1220 = sshll.u32 %s1217, 4
          %s1221 = int_to_ptr.hbm [resolvable:$true] %s1220
          %1226 = dma.vmem_to_hbm [thread:$0]  %s1219, 512, %s1221, %s1200, 128, 256, 8
        $region82: #{tpu_custom_call.1} parent=69 // pred_fallthru
          _
        // Predicated region
        $region83: #{tpu_custom_call.1} parent=69 // pred_check
          %p1227 = pneg %p184
        $region84: #{tpu_custom_call.1} parent=69 // pred_check_branch
          %1229 = sbr.rel (%p1227) target = $region86
        $region85: #{tpu_custom_call.1} parent=69 // pred_region
          %1231 = vsyncadd %s1205, 0
          %s1232 = smul.addr %s30, 8
          %s1233 = sadd.s32 %s31, %s1232
          %s1234 = smul.addr %s1233, 8
          %s1235 = scalar_lea.hbm %s5, %s1234
          %s1236 = sshll.u32 %s1208, 4
          %s1237 = int_to_ptr.vmem [resolvable:$true] %s1236
          %s1238 = sshll.u32 %s1235, 4
          %s1239 = int_to_ptr.hbm [resolvable:$true] %s1238
          %1244 = dma.vmem_to_hbm [thread:$0]  %s1237, 512, %s1239, %s1205, 128, 256, 8
        $region86: #{tpu_custom_call.1} parent=69 // pred_fallthru
          _
      $region70: #{tpu_custom_call.1} parent=5 // pred_fallthru
        _
      %p1245 = scmp.le.s32.totalorder 2, %s21
      // Predicated region
      $region87: #{tpu_custom_call.1} parent=5 // pred_check
        %p1246 = pneg %p1245
      $region88: #{tpu_custom_call.1} parent=5 // pred_check_branch
        %1248 = sbr.rel (%p1246) target = $region90
      $region89: #{tpu_custom_call.1} parent=5 // pred_region
        %s1249 = ssub.s32 %s21, 2
        // Predicated region
        $region91: #{tpu_custom_call.1} parent=89 // pred_check
          %p1250 = pneg %p162
        $region92: #{tpu_custom_call.1} parent=89 // pred_check_branch
          %1252 = sbr.rel (%p1250) target = $region94
        $region93: #{tpu_custom_call.1} parent=89 // pred_region
          %s1253 = sand.u32 %s147, 1
          %s1254 = scalar_lea.sflag [#allocation4], %s1253
          %s1255 = sand.u32 %s147, 1
          %s1256 = smul.addr %s1255, 32
          %s1257 = scalar_lea.vmem [#allocation6], %s1256
          %1259 = dma.done %s1254, 512
        $region94: #{tpu_custom_call.1} parent=89 // pred_fallthru
          _
        // Predicated region
        $region95: #{tpu_custom_call.1} parent=89 // pred_check
          %p1260 = pneg %p190
        $region96: #{tpu_custom_call.1} parent=89 // pred_check_branch
          %1262 = sbr.rel (%p1260) target = $region98
        $region97: #{tpu_custom_call.1} parent=89 // pred_region
          %s1263 = sand.u32 %s175, 1
          %s1264 = scalar_lea.sflag [#allocation8], %s1263
          %s1265 = sand.u32 %s175, 1
          %s1266 = smul.addr %s1265, 32
          %s1267 = scalar_lea.vmem [#allocation7], %s1266
          %1269 = dma.done %s1264, 512
        $region98: #{tpu_custom_call.1} parent=89 // pred_fallthru
          _
      $region90: #{tpu_custom_call.1} parent=5 // pred_fallthru
        _
    $region6: #{tpu_custom_call.1} parent=1 // loop_footer
      %s25 = sadd.s32 1, %s21
    $region7: #{tpu_custom_call.1} parent=1 // loop_footer_branch
      %20 = sbr.rel target = $region3
    $region8: #{tpu_custom_call.1} parent=1 // loop_exit
      _
    %1270 = vsyncpa [#allocation3], 1
    %s1271 = scalar_lea.sflag [#allocation3], 1
    %1272 = vsyncpa %s1271, 1
    %1273 = vsyncpa [#allocation4], 1
    %s1274 = scalar_lea.sflag [#allocation4], 1
    %1275 = vsyncpa %s1274, 1
    %1276 = vsyncpa [#allocation8], 1
    %s1277 = scalar_lea.sflag [#allocation8], 1
    %1278 = vsyncpa %s1277, 1

</llo_original>
